<compile_context>
chip_gen: v6e
topology: v6e:2x2x1
jax: 0.10.0
libtpu: 0.0.40
codegen_flags: <defaults>
</compile_context>

<pallas_src>
import math

import jax
import jax.numpy as jnp
from jax.experimental import pallas as pl
from jax.experimental.pallas import tpu as pltpu


# --------------------------------------------------------------------------- #
# Kernel
# --------------------------------------------------------------------------- #
def _make_random_layer_kernel(seg_offsets, seg_sizes, inv_scale, compute_dtype):
    """Refs: (x_cat, w_cat, o).  x_cat:[tm,sum_k]  w_cat:[sum_k,Npad]  o:[tm,Npad]."""
    num_inputs = len(seg_sizes)

    def kernel(x_ref, w_ref, o_ref):
        def proj(i):
            off, k = seg_offsets[i], seg_sizes[i]  # static python ints
            xi = x_ref[:, off:off + k].astype(compute_dtype)  # in-kernel cast (VPU)
            wi = w_ref[off:off + k, :]                          # already compute_dtype
            return jnp.dot(xi, wi, preferred_element_type=jnp.float32)

        # First projection, scaled by 1 / output_dim**(1/N) (matches PyTorch).
        acc = proj(0) * inv_scale
        # Elementwise-multiply the remaining projections in f32.
        for i in range(1, num_inputs):
            acc = acc * proj(i)
        o_ref[...] = acc.astype(o_ref.dtype)

    return kernel


# --------------------------------------------------------------------------- #
# Helpers
# --------------------------------------------------------------------------- #
def _vmem_capacity_bytes() -> int:
    """Physical VMEM of the local chip; conservative fallback if unknown."""
    try:
        return int(pltpu.get_tpu_info().vmem_capacity_bytes)
    except Exception:
        return 64 << 20  # v7x-sized, safe everywhere


def _weight_spec(shape):
    """Single-buffered, constant-index weight spec (falls back if unsupported)."""
    try:
        return pl.BlockSpec(shape, lambda m: (0, 0), pipeline_mode=pl.Buffered(1))
    except TypeError:
        return pl.BlockSpec(shape, lambda m: (0, 0))


def _pick_tm(B, sum_k, n_pad, x_itemsize, out_itemsize, weight_bytes, vmem_cap):
    """Largest batch tile that divides B and fits the per-generation VMEM cap."""
    headroom = 2 << 20

    def fits(t):
        streamed = (
            2 * t * sum_k * x_itemsize       # double-buffered activation tiles
            + 2 * t * n_pad * out_itemsize   # double-buffered output tiles
            + 2 * t * n_pad * 4              # f32 accumulator / dot intermediates
        )
        return weight_bytes + streamed + headroom <= vmem_cap

    if B % 8 != 0:
        return B  # full-batch block (block dim == full array dim is always legal)

    tm = 8
    for cand in (1024, 512, 256, 128, 64, 32, 16, 8):
        if B % cand == 0 and cand * n_pad * 4 <= (4 << 20) and fits(cand):
            tm = cand
            break

    # Keep >=2 grid steps when the tile stays large: lets ("parallel",) use both
    # TensorCores on v7x at negligible per-step overhead on v5e/v6e.
    if B // tm == 1 and tm >= 256 and (tm // 2) % 8 == 0:
        tm = tm // 2
    return tm


# --------------------------------------------------------------------------- #
# Wrapper
# --------------------------------------------------------------------------- #
def random_layer_forward(
    input_list,
    random_matrices,
    *,
    tm=None,
    compute_dtype=jnp.float32,   # bf16 recommended on v6e/v7x for large K/N
    out_dtype=jnp.float32,       # bf16 halves the dominant HBM writeback stream
):
    """Fused Pallas implementation of RandomLayer.forward.

    input_list[i]:       [B, K_i]
    random_matrices[i]:  [K_i, output_dim]
    returns:             [B, output_dim] out_dtype
    """
    num_inputs = len(input_list)
    assert num_inputs == len(random_matrices) and num_inputs >= 1
    B = input_list[0].shape[0]
    output_dim = random_matrices[0].shape[1]
    for x, w in zip(input_list, random_matrices):
        assert x.shape[0] == B and x.shape[1] == w.shape[0]
        assert w.shape[1] == output_dim

    # Lane-dense output: pad N to a multiple of 128 (unmasked vst), slice after.
    n_pad = -(-output_dim // 128) * 128

    # Build ONE concatenated activation array and ONE stacked weight matrix.
    # Each K_i is padded to a multiple of 8 so in-kernel slices stay
    # sublane-aligned; zero-padded rows/cols contribute nothing to the dot.
    seg_offsets, seg_sizes = [], []
    x_parts, w_parts = [], []
    off = 0
    for x, w in zip(input_list, random_matrices):
        k = x.shape[1]
        k_pad = -(-k // 8) * 8
        seg_offsets.append(off)
        seg_sizes.append(k_pad)
        off += k_pad
        if k_pad != k:
            x = jnp.pad(x, ((0, 0), (0, k_pad - k)))
            w = jnp.pad(w, ((0, k_pad - k), (0, 0)))
        if n_pad != output_dim:
            w = jnp.pad(w, ((0, 0), (0, n_pad - output_dim)))
        x_parts.append(x)                              # activations stay in source dtype
        w_parts.append(w.astype(compute_dtype))        # params cast once ("at init")
    sum_k = off
    x_cat = x_parts[0] if num_inputs == 1 else jnp.concatenate(x_parts, axis=1)
    w_cat = w_parts[0] if num_inputs == 1 else jnp.concatenate(w_parts, axis=0)

    x_itemsize = jnp.dtype(x_cat.dtype).itemsize
    w_itemsize = jnp.dtype(compute_dtype).itemsize
    out_itemsize = jnp.dtype(out_dtype).itemsize
    weight_bytes = sum_k * n_pad * w_itemsize          # single-buffered (Buffered(1))

    # Generation-aware VMEM cap (~85% of physical: ~54 MiB v7x, ~108 MiB v5e/v6e).
    vmem_cap = (_vmem_capacity_bytes() * 85) // 100

    if tm is None:
        tm = _pick_tm(B, sum_k, n_pad, x_itemsize, out_itemsize, weight_bytes, vmem_cap)
    assert B % tm == 0, "tm must divide the batch"
    grid = (B // tm,)

    inv_scale = 1.0 / math.pow(float(output_dim), 1.0 / num_inputs)
    kernel = _make_random_layer_kernel(
        tuple(seg_offsets), tuple(seg_sizes), inv_scale, compute_dtype
    )

    in_specs = [
        pl.BlockSpec((tm, sum_k), lambda m: (m, 0)),   # streamed activations
        _weight_spec((sum_k, n_pad)),                  # resident, single-buffered weights
    ]
    out_spec = pl.BlockSpec((tm, n_pad), lambda m: (m, 0))

    # Tight VMEM estimate: weights once, activations/outputs double-buffered,
    # f32 accumulator headroom + 2 MiB slack (no outer doubling).
    needed = (
        weight_bytes
        + 2 * tm * sum_k * x_itemsize
        + 2 * tm * n_pad * out_itemsize
        + 2 * tm * n_pad * 4
    )
    vmem_limit = int(min(max(needed + (2 << 20), 16 << 20), vmem_cap))

    flops = 2 * B * sum_k * n_pad
    bytes_accessed = int(x_cat.size) * x_itemsize + int(w_cat.size) * w_itemsize \
        + B * n_pad * out_itemsize

    out = pl.pallas_call(
        kernel,
        out_shape=jax.ShapeDtypeStruct((B, n_pad), out_dtype),
        grid_spec=pltpu.PrefetchScalarGridSpec(
            num_scalar_prefetch=0,
            grid=grid,
            in_specs=in_specs,
            out_specs=out_spec,
        ),
        compiler_params=pltpu.CompilerParams(
            dimension_semantics=("parallel",),
            vmem_limit_bytes=vmem_limit,
        ),
        cost_estimate=pl.CostEstimate(
            flops=flops, transcendentals=0, bytes_accessed=bytes_accessed
        ),
    )(x_cat, w_cat)

    if n_pad != output_dim:
        out = out[:, :output_dim]
    return out


# --------------------------------------------------------------------------- #
# Pure-JAX reference (matches the PyTorch forward)
# --------------------------------------------------------------------------- #
def random_layer_reference(input_list, random_matrices, compute_dtype=jnp.float32):
    n = len(input_list)
    mms = [
        jnp.dot(
            x.astype(compute_dtype),
            w.astype(compute_dtype),
            preferred_element_type=jnp.float32,
        )
        for x, w in zip(input_list, random_matrices)
    ]
    out = mms[0] / math.pow(float(random_matrices[0].shape[1]), 1.0 / n)
    for single in mms[1:]:
        out = out * single
    return out


# --------------------------------------------------------------------------- #
# Demo / self-test
# --------------------------------------------------------------------------- #
if __name__ == "__main__":
    key = jax.random.PRNGKey(0)

    # Small shapes consistent with typical DANN-style usage: two input streams
    # (features + class probabilities) sharing one batch.
    batch = 8
    input_dim_list = [32, 16]
    output_dim = 256

    keys = jax.random.split(key, 2 * len(input_dim_list))
    xs = [
        jax.random.normal(keys[i], (batch, input_dim_list[i]), dtype=jnp.float32)
        for i in range(len(input_dim_list))
    ]
    ws = [
        jax.random.normal(
            keys[len(input_dim_list) + i],
            (input_dim_list[i], output_dim),
            dtype=jnp.float32,
        )
        for i in range(len(input_dim_list))
    ]

    # Case 1: tiny problem -> single grid step, everything resident, exact f32.
    out = jax.block_until_ready(random_layer_forward(xs, ws))
    ref = random_layer_reference(xs, ws)
    assert out.shape == (batch, output_dim)
    assert jnp.allclose(out, ref, atol=1e-3, rtol=1e-3), "f32 mismatch (case 1)"

    # Case 2: multi-step grid over the batch; weights stay VMEM-resident.
    batch2 = 64
    xs2 = [
        jax.random.normal(
            jax.random.fold_in(key, 10 + i), (batch2, d), dtype=jnp.float32
        )
        for i, d in enumerate(input_dim_list)
    ]
    out2 = jax.block_until_ready(random_layer_forward(xs2, ws, tm=16))
    ref2 = random_layer_reference(xs2, ws)
    assert jnp.allclose(out2, ref2, atol=1e-3, rtol=1e-3), "f32 mismatch (case 2)"

    # Case 3: bf16 matmul inputs (in-kernel activation cast) + f32 accumulation.
    out_bf = jax.block_until_ready(
        random_layer_forward(xs2, ws, tm=16, compute_dtype=jnp.bfloat16)
    )
    ref_bf = random_layer_reference(xs2, ws, compute_dtype=jnp.bfloat16)
    assert jnp.allclose(out_bf, ref_bf, atol=1e-2, rtol=1e-2), "bf16 mismatch"

    # Case 4: non-128-multiple output_dim -> padded weights / lane-dense stores.
    output_dim2 = 100
    ws3 = [
        jax.random.normal(
            jax.random.fold_in(key, 20 + i), (d, output_dim2), dtype=jnp.float32
        )
        for i, d in enumerate(input_dim_list)
    ]
    out3 = jax.block_until_ready(random_layer_forward(xs, ws3))
    ref3 = random_layer_reference(xs, ws3)
    assert out3.shape == (batch, output_dim2)
    assert jnp.allclose(out3, ref3, atol=1e-3, rtol=1e-3), "f32 mismatch (case 4)"

    print("KERNEL_OK")
</pallas_src>

<mosaic_0001>
module attributes {stable_mosaic.version = 11 : i64} {
  func.func @kernel(%arg0: i32, %arg1: memref<8x48xf32, #tpu.memory_space<vmem>>, %arg2: memref<48x256xf32, #tpu.memory_space<vmem>>, %arg3: memref<8x256xf32, #tpu.memory_space<vmem>>) attributes {dimension_semantics = [#tpu.dimension_semantics<parallel>], iteration_bounds = array<i64: 1>, scalar_prefetch = 0 : i64, scratch_operands = 0 : i64, tpu.core_type = #tpu.core_type<tc>, window_params = [{transform_indices = @transform_0, window_bounds = array<i64: 8, 48>}, {pipeline_mode = #tpu.pipeline_mode<synchronous>, transform_indices = @transform_1, window_bounds = array<i64: 48, 256>}, {transform_indices = @transform_2, window_bounds = array<i64: 8, 256>}]} {
    %c0 = arith.constant 0 : index
    %c0_0 = arith.constant 0 : index
    %0 = vector.load %arg1[%c0, %c0_0] : memref<8x48xf32, #tpu.memory_space<vmem>>, vector<8x32xf32>
    %c0_1 = arith.constant 0 : index
    %c0_2 = arith.constant 0 : index
    %1 = vector.load %arg2[%c0_1, %c0_2] : memref<48x256xf32, #tpu.memory_space<vmem>>, vector<32x256xf32>
    %cst = arith.constant dense<0.000000e+00> : vector<8x256xf32>
    %2 = tpu.matmul %0, %1, %cst {dimension_numbers = #tpu.dot_dimension_numbers<[1], [0], [0], [1], [0, 0, 1, 1], [], []>} : vector<8x32xf32>, vector<32x256xf32>, vector<8x256xf32> -> vector<8x256xf32>
    %cst_3 = arith.constant 6.250000e-02 : f32
    %3 = vector.broadcast %cst_3 : f32 to vector<8x256xf32>
    %4 = arith.mulf %2, %3 : vector<8x256xf32>
    %c0_4 = arith.constant 0 : index
    %c32 = arith.constant 32 : index
    %5 = vector.load %arg1[%c0_4, %c32] : memref<8x48xf32, #tpu.memory_space<vmem>>, vector<8x16xf32>
    %c32_5 = arith.constant 32 : index
    %c0_6 = arith.constant 0 : index
    %6 = vector.load %arg2[%c32_5, %c0_6] : memref<48x256xf32, #tpu.memory_space<vmem>>, vector<16x256xf32>
    %cst_7 = arith.constant dense<0.000000e+00> : vector<8x256xf32>
    %7 = tpu.matmul %5, %6, %cst_7 {dimension_numbers = #tpu.dot_dimension_numbers<[1], [0], [0], [1], [0, 0, 1, 1], [], []>} : vector<8x16xf32>, vector<16x256xf32>, vector<8x256xf32> -> vector<8x256xf32>
    %8 = arith.mulf %4, %7 : vector<8x256xf32>
    %c0_8 = arith.constant 0 : index
    %c0_9 = arith.constant 0 : index
    %9 = vector.load %arg3[%c0_8, %c0_9] : memref<8x256xf32, #tpu.memory_space<vmem>>, vector<8x256xf32>
    tpu.vector_store %arg3[%c0_8, %c0_9], %8 {strides = array<i32>} : memref<8x256xf32, #tpu.memory_space<vmem>>, vector<8x256xf32>,
    return
  }
  func.func @transform_0(%arg0: i32) -> (i32, i32) {
    %c0_i32 = arith.constant 0 : i32
    %c0_i32_0 = arith.constant 0 : i32
    return %arg0, %c0_i32 : i32, i32
  }
  func.func @transform_1(%arg0: i32) -> (i32, i32) {
    %c0_i32 = arith.constant 0 : i32
    %c0_i32_0 = arith.constant 0 : i32
    %c0_i32_1 = arith.constant 0 : i32
    return %c0_i32, %c0_i32_0 : i32, i32
  }
  func.func @transform_2(%arg0: i32) -> (i32, i32) {
    %c0_i32 = arith.constant 0 : i32
    %c0_i32_0 = arith.constant 0 : i32
    return %arg0, %c0_i32 : i32, i32
  }
}

</mosaic_0001>

<llo_original>
// kernel: tpu_custom_call.1
$region0: #{tpu_custom_call.1}
  #allocation0 [shape = 'u32[]', space=smem, size = 0x4, offset = 0x4, fixed_abs, tag = 'smem constant byte address 0x4 - core index']
  #allocation1 [shape = 'u32[144,128]{1,0:T(1,128)}', space=vmem, size = 0x12000, scoped, tag = 'internal scratch']
  %s0 = inlined_call_operand.hbm [shape: f32[8,48], index: 0, kind: input, shape index: {}]
  %s1 = inlined_call_operand.hbm [shape: f32[48,256], index: 1, kind: input, shape index: {}]
  %s2 = inlined_call_operand.hbm [shape: f32[8,256], index: 2, kind: output, shape index: {}]
  %s3 = sld [smem:[#allocation0]]
  $region26: #{tpu_custom_call.1} parent=0
    _
  %s5 = ssub.s32 1, %s3
  %s6 = scalar_select 0, %s5, %s3
  $region1: #{tpu_custom_call.1} parent=0
    #allocation2 [shape = 'u8[4096]{0}', space=vmem, size = 0x1000, scoped, tag = 'input window, operand 0, single buffered']
    #allocation3 [shape = 's32[1]{0}', space=sflag, size = 0x4, scoped, tag = 'scoped memory for tpu_custom_call.1']
    #allocation4 [shape = 's32[1]{0}', space=sflag, size = 0x4, scoped, tag = 'scoped memory for tpu_custom_call.1']
    #allocation5 [shape = 'u8[49152]{0}', space=vmem, size = 0xc000, scoped, tag = 'input window, operand 1, single buffered']
    #allocation6 [shape = 's32[1]{0}', space=sflag, size = 0x4, scoped, tag = 'scoped memory for tpu_custom_call.1']
    #allocation7 [shape = 'u8[8192]{0}', space=vmem, size = 0x2000, scoped, tag = 'output window, operand 0, single buffered']
    %7 = vsyncpa [#allocation3], 0
    %8 = vsyncpa [#allocation6], 0
    %9 = vsyncpa [#allocation4], 0
    // Predicated region
    $region2: #{tpu_custom_call.1} parent=1 // pred_check
      _
    $region3: #{tpu_custom_call.1} parent=1 // pred_check_branch
      %11 = sbr.rel (0) target = $region5
    $region4: #{tpu_custom_call.1} parent=1 // pred_region
      %s13 = ssub.s32 128, 128
      %14 = vsyncadd [#allocation3], %s13
      %s16 = sshll.u32 [#allocation2], 4
      %s17 = int_to_ptr.vmem [resolvable:$true] %s16
      %19 = dma.hbm_to_vmem [thread:$0]  %s0, 128, %s17, [#allocation3]
    $region5: #{tpu_custom_call.1} parent=1 // pred_fallthru
      _
    // Predicated region
    $region6: #{tpu_custom_call.1} parent=1 // pred_check
      _
    $region7: #{tpu_custom_call.1} parent=1 // pred_check_branch
      %21 = sbr.rel (0) target = $region9
    $region8: #{tpu_custom_call.1} parent=1 // pred_region
      %s23 = ssub.s32 1536, 1536
      %24 = vsyncadd [#allocation6], %s23
      %s25 = sshll.u32 [#allocation5], 4
      %s26 = int_to_ptr.vmem [resolvable:$true] %s25
      %31 = dma.hbm_to_vmem [thread:$0]  %s1, 1536, %s26, [#allocation6], 256, 256, 16
    $region9: #{tpu_custom_call.1} parent=1 // pred_fallthru
      _
    // Predicated region
    $region10: #{tpu_custom_call.1} parent=1 // pred_check
      _
    $region11: #{tpu_custom_call.1} parent=1 // pred_check_branch
      %33 = sbr.rel (0) target = $region13
    $region12: #{tpu_custom_call.1} parent=1 // pred_region
      %34 = dma.done [#allocation3], 128
    $region13: #{tpu_custom_call.1} parent=1 // pred_fallthru
      _
    // Predicated region
    $region14: #{tpu_custom_call.1} parent=1 // pred_check
      _
    $region15: #{tpu_custom_call.1} parent=1 // pred_check_branch
      %36 = sbr.rel (0) target = $region17
    $region16: #{tpu_custom_call.1} parent=1 // pred_region
      %37 = dma.done [#allocation6], 1536
    $region17: #{tpu_custom_call.1} parent=1 // pred_fallthru
      _
    %v38 = vld [vmem:[#allocation2] sm:$0xff]
    %v39 = vld [vmem:[#allocation5] sm:$0xff]
    %v40 = vld [vmem:[#allocation5 + $0x8] sm:$0xff]
    %v41 = vld [vmem:[#allocation5 + $0x10] sm:$0xff]
    %v42 = vld [vmem:[#allocation5 + $0x18] sm:$0xff]
    %v43 = vld [vmem:[#allocation5 + $0x20] sm:$0xff]
    %v44 = vld [vmem:[#allocation5 + $0x28] sm:$0xff]
    %v45 = vld [vmem:[#allocation5 + $0x30] sm:$0xff]
    %v46 = vld [vmem:[#allocation5 + $0x38] sm:$0xff]
    %vm47 = vcmask 261120
    %v49 = vsel %vm47, %v38, 0
    %51 = vmatprep.subr.mxu0 0.0
    %52 = vmatpush1.msra.mxu0 0.0
    %53 = vmatprep.subr.mxu0 0.0
    %54 = vmatpush1.msra.mxu0 0.0
    %55 = vmatprep.subr.mxu0 0.0
    %56 = vmatpush1.msra.mxu0 0.0
    %57 = vmatprep.subr.mxu0 0.0
    %58 = vmatpush1.msra.mxu0 0.0
    %59 = vmatprep.subr.mxu0 0.0
    %60 = vmatpush1.msra.mxu0 0.0
    %61 = vmatprep.subr.mxu0 0.0
    %62 = vmatpush1.msra.mxu0 0.0
    %63 = vmatprep.subr.mxu0 0.0
    %64 = vmatpush1.msra.mxu0 0.0
    %65 = vmatprep.subr.mxu0 0.0
    %66 = vmatpush1.msra.mxu0 0.0
    %67 = vmatprep.subr.mxu0 0.0
    %68 = vmatpush1.msra.mxu0 0.0
    %69 = vmatprep.subr.mxu0 0.0
    %70 = vmatpush1.msra.mxu0 0.0
    %71 = vmatprep.subr.mxu0 0.0
    %72 = vmatpush1.msra.mxu0 0.0
    %73 = vmatprep.subr.mxu0 0.0
    %74 = vmatpush1.msra.mxu0 0.0
    %75 = vmatprep.subr.mxu0 %v46
    %76 = vmatpush1.msra.mxu0 %v45
    %77 = vmatprep.subr.mxu0 %v44
    %78 = vmatpush1.msra.mxu0 %v43
    %79 = vmatprep.subr.mxu0 %v42
    %80 = vmatpush1.msra.mxu0 %v41
    %81 = vmatprep.subr.mxu0 %v40
    %82 = vmatpush1.msra.mxu0 %v39
    %83 = vmatprep.subr.mxu0 0.0
    %84 = vmatpush2.msra.mxu0 0.0
    %85 = vmatprep.subr.mxu0 0.0
    %86 = vmatpush2.msra.mxu0 0.0
    %87 = vmatprep.subr.mxu0 0.0
    %88 = vmatpush2.msra.mxu0 0.0
    %89 = vmatprep.subr.mxu0 0.0
    %90 = vmatpush2.msra.mxu0 0.0
    %91 = vmatprep.subr.mxu0 0.0
    %92 = vmatpush2.msra.mxu0 0.0
    %93 = vmatprep.subr.mxu0 0.0
    %94 = vmatpush2.msra.mxu0 0.0
    %95 = vmatprep.subr.mxu0 0.0
    %96 = vmatpush2.msra.mxu0 0.0
    %97 = vmatprep.subr.mxu0 0.0
    %98 = vmatpush2.msra.mxu0 0.0
    %99 = vmatprep.subr.mxu0 0.0
    %100 = vmatpush2.msra.mxu0 0.0
    %101 = vmatprep.subr.mxu0 0.0
    %102 = vmatpush2.msra.mxu0 0.0
    %103 = vmatprep.subr.mxu0 0.0
    %104 = vmatpush2.msra.mxu0 0.0
    %105 = vmatprep.subr.mxu0 0.0
    %106 = vmatpush2.msra.mxu0 0.0
    %107 = vmatprep.subr.mxu0 0.0
    %108 = vmatpush2.msra.mxu0 0.0
    %109 = vmatprep.subr.mxu0 0.0
    %110 = vmatpush2.msra.mxu0 0.0
    %111 = vmatprep.subr.mxu0 0.0
    %112 = vmatpush2.msra.mxu0 0.0
    %113 = vmatprep.subr.mxu0 0.0
    %114 = vmatpush2.msra.mxu0 0.0
    %115 = vmatprep.mubr.f32.mxu0 0.0
    %116 = vmatmul.mubr.f32.gmra.mxu0 %v49
    %v117 = vpop.f32.mrf.mxu0
    %v118 = vadd.f32 0.0, %v117
    %v119 = vpop.f32.mrf.mxu0
    %v120 = vadd.f32 0.0, %v119
    %121 = vdwg.mxu0
    %v122 = vmul.f32 %v118, 0.0625
    %v123 = vmul.f32 %v120, 0.0625
    %v124 = vld [vmem:[#allocation5 + $0x40] sm:$0xff]
    %v125 = vld [vmem:[#allocation5 + $0x48] sm:$0xff]
    %v126 = vld [vmem:[#allocation5 + $0x50] sm:$0xff]
    %v127 = vld [vmem:[#allocation5 + $0x58] sm:$0xff]
    %128 = vrot.lane.b32.xlu0 %v38, 96
    %v129 = vpop.permute.xlu0 %128
    %vm130 = vcmask 130048
    %v131 = vsel %vm130, %v129, 0
    %133 = vmatprep.subr.mxu0 0.0
    %134 = vmatpush1.msra.mxu0 0.0
    %135 = vmatprep.subr.mxu0 0.0
    %136 = vmatpush1.msra.mxu0 0.0
    %137 = vmatprep.subr.mxu0 0.0
    %138 = vmatpush1.msra.mxu0 0.0
    %139 = vmatprep.subr.mxu0 0.0
    %140 = vmatpush1.msra.mxu0 0.0
    %141 = vmatprep.subr.mxu0 0.0
    %142 = vmatpush1.msra.mxu0 0.0
    %143 = vmatprep.subr.mxu0 0.0
    %144 = vmatpush1.msra.mxu0 0.0
    %145 = vmatprep.subr.mxu0 0.0
    %146 = vmatpush1.msra.mxu0 0.0
    %147 = vmatprep.subr.mxu0 0.0
    %148 = vmatpush1.msra.mxu0 0.0
    %149 = vmatprep.subr.mxu0 0.0
    %150 = vmatpush1.msra.mxu0 0.0
    %151 = vmatprep.subr.mxu0 0.0
    %152 = vmatpush1.msra.mxu0 0.0
    %153 = vmatprep.subr.mxu0 0.0
    %154 = vmatpush1.msra.mxu0 0.0
    %155 = vmatprep.subr.mxu0 0.0
    %156 = vmatpush1.msra.mxu0 0.0
    %157 = vmatprep.subr.mxu0 0.0
    %158 = vmatpush1.msra.mxu0 0.0
    %159 = vmatprep.subr.mxu0 0.0
    %160 = vmatpush1.msra.mxu0 0.0
    %161 = vmatprep.subr.mxu0 %v127
    %162 = vmatpush1.msra.mxu0 %v126
    %163 = vmatprep.subr.mxu0 %v125
    %164 = vmatpush1.msra.mxu0 %v124
    %165 = vmatprep.subr.mxu0 0.0
    %166 = vmatpush2.msra.mxu0 0.0
    %167 = vmatprep.subr.mxu0 0.0
    %168 = vmatpush2.msra.mxu0 0.0
    %169 = vmatprep.subr.mxu0 0.0
    %170 = vmatpush2.msra.mxu0 0.0
    %171 = vmatprep.subr.mxu0 0.0
    %172 = vmatpush2.msra.mxu0 0.0
    %173 = vmatprep.subr.mxu0 0.0
    %174 = vmatpush2.msra.mxu0 0.0
    %175 = vmatprep.subr.mxu0 0.0
    %176 = vmatpush2.msra.mxu0 0.0
    %177 = vmatprep.subr.mxu0 0.0
    %178 = vmatpush2.msra.mxu0 0.0
    %179 = vmatprep.subr.mxu0 0.0
    %180 = vmatpush2.msra.mxu0 0.0
    %181 = vmatprep.subr.mxu0 0.0
    %182 = vmatpush2.msra.mxu0 0.0
    %183 = vmatprep.subr.mxu0 0.0
    %184 = vmatpush2.msra.mxu0 0.0
    %185 = vmatprep.subr.mxu0 0.0
    %186 = vmatpush2.msra.mxu0 0.0
    %187 = vmatprep.subr.mxu0 0.0
    %188 = vmatpush2.msra.mxu0 0.0
    %189 = vmatprep.subr.mxu0 0.0
    %190 = vmatpush2.msra.mxu0 0.0
    %191 = vmatprep.subr.mxu0 0.0
    %192 = vmatpush2.msra.mxu0 0.0
    %193 = vmatprep.subr.mxu0 0.0
    %194 = vmatpush2.msra.mxu0 0.0
    %195 = vmatprep.subr.mxu0 0.0
    %196 = vmatpush2.msra.mxu0 0.0
    %197 = vmatprep.mubr.f32.mxu0 0.0
    %198 = vmatmul.mubr.f32.gmra.mxu0 %v131
    %v199 = vpop.f32.mrf.mxu0
    %v200 = vadd.f32 0.0, %v199
    %v201 = vpop.f32.mrf.mxu0
    %v202 = vadd.f32 0.0, %v201
    %203 = vdwg.mxu0
    %v204 = vmul.f32 %v122, %v200
    %v205 = vmul.f32 %v123, %v202
    %206 = vst [vmem:[#allocation7] sm:$0xff] %v204
    %207 = vst [vmem:[#allocation7 + $0x8] sm:$0xff] %v205
    // Predicated region
    $region18: #{tpu_custom_call.1} parent=1 // pred_check
      _
    $region19: #{tpu_custom_call.1} parent=1 // pred_check_branch
      %209 = sbr.rel (0) target = $region21
    $region20: #{tpu_custom_call.1} parent=1 // pred_region
      %s211 = ssub.s32 256, 256
      %212 = vsyncadd [#allocation4], %s211
      %s214 = sshll.u32 [#allocation7], 4
      %s215 = int_to_ptr.vmem [resolvable:$true] %s214
      %217 = dma.vmem_to_hbm [thread:$0]  %s215, 256, %s2, [#allocation4]
    $region21: #{tpu_custom_call.1} parent=1 // pred_fallthru
      _
    // Predicated region
    $region22: #{tpu_custom_call.1} parent=1 // pred_check
      _
    $region23: #{tpu_custom_call.1} parent=1 // pred_check_branch
      %219 = sbr.rel (0) target = $region25
    $region24: #{tpu_custom_call.1} parent=1 // pred_region
      %220 = dma.done [#allocation4], 256
    $region25: #{tpu_custom_call.1} parent=1 // pred_fallthru
      _
    %221 = vsyncpa [#allocation3], 1
    %222 = vsyncpa [#allocation6], 1
    %223 = vsyncpa [#allocation4], 1

</llo_original>
